<compile_context>
chip_gen: v6e
topology: v6e:2x2x1
jax: 0.10.0
libtpu: 0.0.40
codegen_flags: <defaults>
</compile_context>

<pallas_src>
import functools
import math

import jax
import jax.numpy as jnp
from jax import lax
from jax.experimental import pallas as pl
from jax.experimental.pallas import tpu as pltpu


def _vmem_limit_bytes():
    """~75% of physical VMEM: ~96 MiB on v5e/v6e (128 MiB parts), ~48 MiB on v7x (64 MiB)."""
    try:
        cap = pltpu.get_tpu_info().vmem_capacity_bytes
    except Exception:
        cap = 64 * 1024 * 1024  # conservative fallback -> 48 MiB limit
    return min(int(cap) * 3 // 4, 112 * 1024 * 1024)


def _fused_attention_body(x_ref, wqkv_ref, bqkv_ref, wo_ref, bo_ref,
                          out_ref, probs_ref, *, num_heads):
    S, H = x_ref.shape
    d = H // num_heads

    # --- 1) fused QKV projection: one dense MXU GEMM (N = 3H keeps the MXU well fed) ---
    x = x_ref[...]                                                       # (S, H) bf16
    qkv = jnp.dot(x, wqkv_ref[...], preferred_element_type=jnp.float32)  # (S, 3H) f32
    qkv = (qkv + bqkv_ref[...]).astype(jnp.bfloat16)                     # (S, 3H) bf16

    # --- 2) per-head attention, all heads inside this single grid step -----------------
    # Static unroll (nh is small: 4 here, 12 for ViT); all slices are static lane slices
    # of the VMEM-resident qkv value, so nothing round-trips through HBM.
    ctx_heads = []
    for h in range(num_heads):
        q_h = qkv[:, h * d:(h + 1) * d]                     # 1/sqrt(d) folded into Wq/bq
        k_h = qkv[:, H + h * d: H + (h + 1) * d]
        v_h = qkv[:, 2 * H + h * d: 2 * H + (h + 1) * d]
        scores = lax.dot_general(q_h, k_h, (((1,), (1,)), ((), ())),
                                 preferred_element_type=jnp.float32)     # (S, S) f32
        m = jnp.max(scores, axis=-1, keepdims=True)
        e = jnp.exp(scores - m)
        denom = jnp.sum(e, axis=-1, keepdims=True)
        probs = e / denom               # exact softmax: probs is a user-visible output
        if probs_ref is not None:
            probs_ref[h] = probs
        ctx_heads.append(jnp.dot(probs.astype(jnp.bfloat16), v_h,
                                 preferred_element_type=jnp.float32))    # (S, d) f32

    # --- 3) head merge (lane concat, stays in VMEM) + output projection ----------------
    ctx = jnp.concatenate(ctx_heads, axis=-1).astype(jnp.bfloat16)       # (S, H) bf16
    out = jnp.dot(ctx, wo_ref[...], preferred_element_type=jnp.float32) + bo_ref[...]
    out_ref[...] = out.astype(out_ref.dtype)


def _fused_attention_kernel_vis(x_ref, wqkv_ref, bqkv_ref, wo_ref, bo_ref,
                                out_ref, probs_ref, *, num_heads):
    _fused_attention_body(x_ref, wqkv_ref, bqkv_ref, wo_ref, bo_ref,
                          out_ref, probs_ref, num_heads=num_heads)


def _fused_attention_kernel_novis(x_ref, wqkv_ref, bqkv_ref, wo_ref, bo_ref,
                                  out_ref, *, num_heads):
    _fused_attention_body(x_ref, wqkv_ref, bqkv_ref, wo_ref, bo_ref,
                          out_ref, None, num_heads=num_heads)


def attention_forward(hidden_states, params, num_heads, vis=True):
    """hidden_states: (B, S, H) f32. params: PyTorch-layout (out,in) weights / (out,) biases."""
    B, S, H = hidden_states.shape
    assert H % num_heads == 0
    d = H // num_heads
    scale = 1.0 / math.sqrt(d)

    # (out,in) -> (in,out) so the kernel computes x @ W + b; fold softmax scale into Q proj
    # (scales S*d query elements instead of S*S scores).
    wq = params["wq"].T * scale
    w_qkv = jnp.concatenate([wq, params["wk"].T, params["wv"].T], axis=1)
    w_qkv = w_qkv.astype(jnp.bfloat16)                                   # (H, 3H)
    b_qkv = jnp.concatenate([params["bq"] * scale, params["bk"], params["bv"]])
    b_qkv = b_qkv.reshape(1, 3 * H).astype(jnp.float32)                  # (1, 3H)
    wo_b = params["wo"].T.astype(jnp.bfloat16)                           # (H, H)
    bo_b = params["bo"].reshape(1, H).astype(jnp.float32)                # (1, H)
    x_b = hidden_states.astype(jnp.bfloat16)

    const2 = lambda b: (0, 0)
    in_specs = [
        pl.BlockSpec((None, S, H), lambda b: (b, 0, 0)),   # x: one batch element per step
        pl.BlockSpec((H, 3 * H), const2),                  # weights: constant index map,
        pl.BlockSpec((1, 3 * H), const2),                  #   VMEM-resident, no re-DMA
        pl.BlockSpec((H, H), const2),
        pl.BlockSpec((1, H), const2),
    ]
    out_spec = pl.BlockSpec((None, S, H), lambda b: (b, 0, 0))

    compiler_params = pltpu.CompilerParams(
        dimension_semantics=("parallel",),       # even B -> both v7x TensorCores get work
        vmem_limit_bytes=_vmem_limit_bytes())

    if vis:
        out, probs = pl.pallas_call(
            functools.partial(_fused_attention_kernel_vis, num_heads=num_heads),
            out_shape=(jax.ShapeDtypeStruct((B, S, H), hidden_states.dtype),
                       jax.ShapeDtypeStruct((B, num_heads, S, S), jnp.float32)),
            grid_spec=pltpu.PrefetchScalarGridSpec(
                num_scalar_prefetch=0,
                grid=(B,),
                in_specs=in_specs,
                out_specs=[out_spec,
                           pl.BlockSpec((None, num_heads, S, S), lambda b: (b, 0, 0, 0))]),
            compiler_params=compiler_params,
        )(x_b, w_qkv, b_qkv, wo_b, bo_b)
        return out, probs

    out = pl.pallas_call(
        functools.partial(_fused_attention_kernel_novis, num_heads=num_heads),
        out_shape=jax.ShapeDtypeStruct((B, S, H), hidden_states.dtype),
        grid_spec=pltpu.PrefetchScalarGridSpec(
            num_scalar_prefetch=0,
            grid=(B,),
            in_specs=in_specs,
            out_specs=out_spec),
        compiler_params=compiler_params,
    )(x_b, w_qkv, b_qkv, wo_b, bo_b)
    return out, None


def attention_reference(hidden_states, params, num_heads):
    """Pure-JAX f32 reference matching the PyTorch module (eval mode)."""
    B, S, H = hidden_states.shape
    d = H // num_heads
    lin = lambda x, w, b: x @ w.T + b
    q = lin(hidden_states, params["wq"], params["bq"])
    k = lin(hidden_states, params["wk"], params["bk"])
    v = lin(hidden_states, params["wv"], params["bv"])
    split = lambda t: t.reshape(B, S, num_heads, d).transpose(0, 2, 1, 3)
    q, k, v = split(q), split(k), split(v)
    scores = jnp.einsum("bhqd,bhkd->bhqk", q, k) / math.sqrt(d)
    probs = jax.nn.softmax(scores, axis=-1)
    ctx = jnp.einsum("bhqk,bhkd->bhqd", probs, v)
    ctx = ctx.transpose(0, 2, 1, 3).reshape(B, S, H)
    out = lin(ctx, params["wo"], params["bo"])
    return out, probs


def init_params(key, hidden_size):
    """Deterministic synthetic Linear params, PyTorch layout (out, in) / (out,)."""
    ks = jax.random.split(key, 8)
    bound = 1.0 / math.sqrt(hidden_size)
    u = lambda k, shape: jax.random.uniform(k, shape, jnp.float32, -bound, bound)
    return {
        "wq": u(ks[0], (hidden_size, hidden_size)), "bq": u(ks[1], (hidden_size,)),
        "wk": u(ks[2], (hidden_size, hidden_size)), "bk": u(ks[3], (hidden_size,)),
        "wv": u(ks[4], (hidden_size, hidden_size)), "bv": u(ks[5], (hidden_size,)),
        "wo": u(ks[6], (hidden_size, hidden_size)), "bo": u(ks[7], (hidden_size,)),
    }


if __name__ == "__main__":
    # Small config consistent with the module: hidden_size=32, num_heads=4 -> head_dim=8.
    B, S, H = 2, 8, 32
    NUM_HEADS = 4

    key = jax.random.PRNGKey(0)
    k_x, k_p = jax.random.split(key)
    hidden_states = jax.random.normal(k_x, (B, S, H), jnp.float32)
    params = init_params(k_p, H)

    # vis=True path (returns attention weights, like the torch module with vis=True).
    out, weights = attention_forward(hidden_states, params, NUM_HEADS, vis=True)
    out = jax.block_until_ready(out)
    weights = jax.block_until_ready(weights)
    assert out.shape == (B, S, H)
    assert weights.shape == (B, NUM_HEADS, S, S)

    # vis=False path (no probs writeback at all).
    out_novis, weights_none = attention_forward(hidden_states, params, NUM_HEADS, vis=False)
    out_novis = jax.block_until_ready(out_novis)
    assert weights_none is None

    # Loose tolerance: kernel uses bf16 MXU operands with f32 accumulation.
    out_ref, probs_ref = attention_reference(hidden_states, params, NUM_HEADS)
    assert jnp.allclose(weights, probs_ref, atol=5e-2, rtol=5e-2)
    assert jnp.allclose(out, out_ref, atol=5e-2, rtol=5e-2)
    assert jnp.allclose(out_novis, out, atol=1e-6, rtol=1e-6)

    print("KERNEL_OK")
</pallas_src>

<mosaic_0001>
module attributes {stable_mosaic.version = 11 : i64} {
  func.func @_fused_attention_kernel_vis(%arg0: i32, %arg1: memref<1x8x32xbf16, #tpu.memory_space<vmem>>, %arg2: memref<32x96xbf16, #tpu.memory_space<vmem>>, %arg3: memref<1x96xf32, #tpu.memory_space<vmem>>, %arg4: memref<32x32xbf16, #tpu.memory_space<vmem>>, %arg5: memref<1x32xf32, #tpu.memory_space<vmem>>, %arg6: memref<1x8x32xf32, #tpu.memory_space<vmem>>, %arg7: memref<1x4x8x8xf32, #tpu.memory_space<vmem>>) attributes {dimension_semantics = [#tpu.dimension_semantics<parallel>], iteration_bounds = array<i64: 2>, scalar_prefetch = 0 : i64, scratch_operands = 0 : i64, tpu.core_type = #tpu.core_type<tc>, window_params = [{transform_indices = @transform_0, window_bounds = array<i64: 1, 8, 32>}, {pipeline_mode = #tpu.pipeline_mode<synchronous>, transform_indices = @transform_1, window_bounds = array<i64: 32, 96>}, {pipeline_mode = #tpu.pipeline_mode<synchronous>, transform_indices = @transform_2, window_bounds = array<i64: 1, 96>}, {pipeline_mode = #tpu.pipeline_mode<synchronous>, transform_indices = @transform_3, window_bounds = array<i64: 32, 32>}, {pipeline_mode = #tpu.pipeline_mode<synchronous>, transform_indices = @transform_4, window_bounds = array<i64: 1, 32>}, {transform_indices = @transform_5, window_bounds = array<i64: 1, 8, 32>}, {transform_indices = @transform_6, window_bounds = array<i64: 1, 4, 8, 8>}]} {
    %c0 = arith.constant 0 : index
    %c0_0 = arith.constant 0 : index
    %c0_1 = arith.constant 0 : index
    %0 = vector.load %arg1[%c0, %c0_0, %c0_1] : memref<1x8x32xbf16, #tpu.memory_space<vmem>>, vector<1x8x32xbf16>
    %1 = vector.shape_cast %0 : vector<1x8x32xbf16> to vector<8x32xbf16>
    %c0_2 = arith.constant 0 : index
    %c0_3 = arith.constant 0 : index
    %2 = vector.load %arg2[%c0_2, %c0_3] : memref<32x96xbf16, #tpu.memory_space<vmem>>, vector<32x96xbf16>
    %cst = arith.constant dense<0.000000e+00> : vector<8x96xf32>
    %3 = tpu.matmul %1, %2, %cst {dimension_numbers = #tpu.dot_dimension_numbers<[1], [0], [0], [1], [0, 0, 1, 1], [], []>} : vector<8x32xbf16>, vector<32x96xbf16>, vector<8x96xf32> -> vector<8x96xf32>
    %c0_4 = arith.constant 0 : index
    %c0_5 = arith.constant 0 : index
    %4 = vector.load %arg3[%c0_4, %c0_5] : memref<1x96xf32, #tpu.memory_space<vmem>>, vector<1x96xf32>
    %5 = vector.broadcast %4 : vector<1x96xf32> to vector<8x96xf32>
    %6 = arith.addf %3, %5 : vector<8x96xf32>
    %7 = arith.truncf %6 : vector<8x96xf32> to vector<8x96xbf16>
    %8 = vector.extract_strided_slice %7 {offsets = [0, 0], sizes = [8, 8], strides = [1, 1]} : vector<8x96xbf16> to vector<8x8xbf16>
    %9 = vector.extract_strided_slice %7 {offsets = [0, 32], sizes = [8, 8], strides = [1, 1]} : vector<8x96xbf16> to vector<8x8xbf16>
    %10 = vector.extract_strided_slice %7 {offsets = [0, 64], sizes = [8, 8], strides = [1, 1]} : vector<8x96xbf16> to vector<8x8xbf16>
    %cst_6 = arith.constant dense<0.000000e+00> : vector<8x8xf32>
    %11 = tpu.matmul %8, %9, %cst_6 {dimension_numbers = #tpu.dot_dimension_numbers<[1], [1], [0], [0], [0, 0, 1, 0], [], []>} : vector<8x8xbf16>, vector<8x8xbf16>, vector<8x8xf32> -> vector<8x8xf32>
    %cst_7 = arith.constant dense<0xFF800000> : vector<8xf32>
    %12 = vector.multi_reduction <maximumf>, %11, %cst_7 [1] : vector<8x8xf32> to vector<8xf32>
    %13 = vector.shape_cast %12 : vector<8xf32> to vector<8x1xf32>
    %14 = vector.broadcast %13 : vector<8x1xf32> to vector<8x8xf32>
    %15 = arith.subf %11, %14 : vector<8x8xf32>
    %16 = math.exp %15 : vector<8x8xf32>
    %cst_8 = arith.constant dense<0.000000e+00> : vector<8xf32>
    %17 = vector.multi_reduction <add>, %16, %cst_8 [1] : vector<8x8xf32> to vector<8xf32>
    %18 = vector.shape_cast %17 : vector<8xf32> to vector<8x1xf32>
    %19 = vector.broadcast %18 : vector<8x1xf32> to vector<8x8xf32>
    %20 = arith.divf %16, %19 : vector<8x8xf32>
    %c0_9 = arith.constant 0 : index
    %c0_10 = arith.constant 0 : index
    %c0_11 = arith.constant 0 : index
    %c0_12 = arith.constant 0 : index
    %21 = vector.load %arg7[%c0_9, %c0_10, %c0_11, %c0_12] : memref<1x4x8x8xf32, #tpu.memory_space<vmem>>, vector<1x1x8x8xf32>
    %22 = vector.shape_cast %21 : vector<1x1x8x8xf32> to vector<8x8xf32>
    %23 = vector.shape_cast %20 : vector<8x8xf32> to vector<1x1x8x8xf32>
    tpu.vector_store %arg7[%c0_9, %c0_10, %c0_11, %c0_12], %23 {strides = array<i32>} : memref<1x4x8x8xf32, #tpu.memory_space<vmem>>, vector<1x1x8x8xf32>,
    %24 = arith.truncf %20 : vector<8x8xf32> to vector<8x8xbf16>
    %cst_13 = arith.constant dense<0.000000e+00> : vector<8x8xf32>
    %25 = tpu.matmul %24, %10, %cst_13 {dimension_numbers = #tpu.dot_dimension_numbers<[1], [0], [0], [1], [0, 0, 1, 1], [], []>} : vector<8x8xbf16>, vector<8x8xbf16>, vector<8x8xf32> -> vector<8x8xf32>
    %26 = vector.extract_strided_slice %7 {offsets = [0, 8], sizes = [8, 8], strides = [1, 1]} : vector<8x96xbf16> to vector<8x8xbf16>
    %27 = vector.extract_strided_slice %7 {offsets = [0, 40], sizes = [8, 8], strides = [1, 1]} : vector<8x96xbf16> to vector<8x8xbf16>
    %28 = vector.extract_strided_slice %7 {offsets = [0, 72], sizes = [8, 8], strides = [1, 1]} : vector<8x96xbf16> to vector<8x8xbf16>
    %cst_14 = arith.constant dense<0.000000e+00> : vector<8x8xf32>
    %29 = tpu.matmul %26, %27, %cst_14 {dimension_numbers = #tpu.dot_dimension_numbers<[1], [1], [0], [0], [0, 0, 1, 0], [], []>} : vector<8x8xbf16>, vector<8x8xbf16>, vector<8x8xf32> -> vector<8x8xf32>
    %cst_15 = arith.constant dense<0xFF800000> : vector<8xf32>
    %30 = vector.multi_reduction <maximumf>, %29, %cst_15 [1] : vector<8x8xf32> to vector<8xf32>
    %31 = vector.shape_cast %30 : vector<8xf32> to vector<8x1xf32>
    %32 = vector.broadcast %31 : vector<8x1xf32> to vector<8x8xf32>
    %33 = arith.subf %29, %32 : vector<8x8xf32>
    %34 = math.exp %33 : vector<8x8xf32>
    %cst_16 = arith.constant dense<0.000000e+00> : vector<8xf32>
    %35 = vector.multi_reduction <add>, %34, %cst_16 [1] : vector<8x8xf32> to vector<8xf32>
    %36 = vector.shape_cast %35 : vector<8xf32> to vector<8x1xf32>
    %37 = vector.broadcast %36 : vector<8x1xf32> to vector<8x8xf32>
    %38 = arith.divf %34, %37 : vector<8x8xf32>
    %c0_17 = arith.constant 0 : index
    %c1 = arith.constant 1 : index
    %c0_18 = arith.constant 0 : index
    %c0_19 = arith.constant 0 : index
    %39 = vector.load %arg7[%c0_17, %c1, %c0_18, %c0_19] : memref<1x4x8x8xf32, #tpu.memory_space<vmem>>, vector<1x1x8x8xf32>
    %40 = vector.shape_cast %39 : vector<1x1x8x8xf32> to vector<8x8xf32>
    %41 = vector.shape_cast %38 : vector<8x8xf32> to vector<1x1x8x8xf32>
    tpu.vector_store %arg7[%c0_17, %c1, %c0_18, %c0_19], %41 {strides = array<i32>} : memref<1x4x8x8xf32, #tpu.memory_space<vmem>>, vector<1x1x8x8xf32>,
    %42 = arith.truncf %38 : vector<8x8xf32> to vector<8x8xbf16>
    %cst_20 = arith.constant dense<0.000000e+00> : vector<8x8xf32>
    %43 = tpu.matmul %42, %28, %cst_20 {dimension_numbers = #tpu.dot_dimension_numbers<[1], [0], [0], [1], [0, 0, 1, 1], [], []>} : vector<8x8xbf16>, vector<8x8xbf16>, vector<8x8xf32> -> vector<8x8xf32>
    %44 = vector.extract_strided_slice %7 {offsets = [0, 16], sizes = [8, 8], strides = [1, 1]} : vector<8x96xbf16> to vector<8x8xbf16>
    %45 = vector.extract_strided_slice %7 {offsets = [0, 48], sizes = [8, 8], strides = [1, 1]} : vector<8x96xbf16> to vector<8x8xbf16>
    %46 = vector.extract_strided_slice %7 {offsets = [0, 80], sizes = [8, 8], strides = [1, 1]} : vector<8x96xbf16> to vector<8x8xbf16>
    %cst_21 = arith.constant dense<0.000000e+00> : vector<8x8xf32>
    %47 = tpu.matmul %44, %45, %cst_21 {dimension_numbers = #tpu.dot_dimension_numbers<[1], [1], [0], [0], [0, 0, 1, 0], [], []>} : vector<8x8xbf16>, vector<8x8xbf16>, vector<8x8xf32> -> vector<8x8xf32>
    %cst_22 = arith.constant dense<0xFF800000> : vector<8xf32>
    %48 = vector.multi_reduction <maximumf>, %47, %cst_22 [1] : vector<8x8xf32> to vector<8xf32>
    %49 = vector.shape_cast %48 : vector<8xf32> to vector<8x1xf32>
    %50 = vector.broadcast %49 : vector<8x1xf32> to vector<8x8xf32>
    %51 = arith.subf %47, %50 : vector<8x8xf32>
    %52 = math.exp %51 : vector<8x8xf32>
    %cst_23 = arith.constant dense<0.000000e+00> : vector<8xf32>
    %53 = vector.multi_reduction <add>, %52, %cst_23 [1] : vector<8x8xf32> to vector<8xf32>
    %54 = vector.shape_cast %53 : vector<8xf32> to vector<8x1xf32>
    %55 = vector.broadcast %54 : vector<8x1xf32> to vector<8x8xf32>
    %56 = arith.divf %52, %55 : vector<8x8xf32>
    %c0_24 = arith.constant 0 : index
    %c2 = arith.constant 2 : index
    %c0_25 = arith.constant 0 : index
    %c0_26 = arith.constant 0 : index
    %57 = vector.load %arg7[%c0_24, %c2, %c0_25, %c0_26] : memref<1x4x8x8xf32, #tpu.memory_space<vmem>>, vector<1x1x8x8xf32>
    %58 = vector.shape_cast %57 : vector<1x1x8x8xf32> to vector<8x8xf32>
    %59 = vector.shape_cast %56 : vector<8x8xf32> to vector<1x1x8x8xf32>
    tpu.vector_store %arg7[%c0_24, %c2, %c0_25, %c0_26], %59 {strides = array<i32>} : memref<1x4x8x8xf32, #tpu.memory_space<vmem>>, vector<1x1x8x8xf32>,
    %60 = arith.truncf %56 : vector<8x8xf32> to vector<8x8xbf16>
    %cst_27 = arith.constant dense<0.000000e+00> : vector<8x8xf32>
    %61 = tpu.matmul %60, %46, %cst_27 {dimension_numbers = #tpu.dot_dimension_numbers<[1], [0], [0], [1], [0, 0, 1, 1], [], []>} : vector<8x8xbf16>, vector<8x8xbf16>, vector<8x8xf32> -> vector<8x8xf32>
    %62 = vector.extract_strided_slice %7 {offsets = [0, 24], sizes = [8, 8], strides = [1, 1]} : vector<8x96xbf16> to vector<8x8xbf16>
    %63 = vector.extract_strided_slice %7 {offsets = [0, 56], sizes = [8, 8], strides = [1, 1]} : vector<8x96xbf16> to vector<8x8xbf16>
    %64 = vector.extract_strided_slice %7 {offsets = [0, 88], sizes = [8, 8], strides = [1, 1]} : vector<8x96xbf16> to vector<8x8xbf16>
    %cst_28 = arith.constant dense<0.000000e+00> : vector<8x8xf32>
    %65 = tpu.matmul %62, %63, %cst_28 {dimension_numbers = #tpu.dot_dimension_numbers<[1], [1], [0], [0], [0, 0, 1, 0], [], []>} : vector<8x8xbf16>, vector<8x8xbf16>, vector<8x8xf32> -> vector<8x8xf32>
    %cst_29 = arith.constant dense<0xFF800000> : vector<8xf32>
    %66 = vector.multi_reduction <maximumf>, %65, %cst_29 [1] : vector<8x8xf32> to vector<8xf32>
    %67 = vector.shape_cast %66 : vector<8xf32> to vector<8x1xf32>
    %68 = vector.broadcast %67 : vector<8x1xf32> to vector<8x8xf32>
    %69 = arith.subf %65, %68 : vector<8x8xf32>
    %70 = math.exp %69 : vector<8x8xf32>
    %cst_30 = arith.constant dense<0.000000e+00> : vector<8xf32>
    %71 = vector.multi_reduction <add>, %70, %cst_30 [1] : vector<8x8xf32> to vector<8xf32>
    %72 = vector.shape_cast %71 : vector<8xf32> to vector<8x1xf32>
    %73 = vector.broadcast %72 : vector<8x1xf32> to vector<8x8xf32>
    %74 = arith.divf %70, %73 : vector<8x8xf32>
    %c0_31 = arith.constant 0 : index
    %c3 = arith.constant 3 : index
    %c0_32 = arith.constant 0 : index
    %c0_33 = arith.constant 0 : index
    %75 = vector.load %arg7[%c0_31, %c3, %c0_32, %c0_33] : memref<1x4x8x8xf32, #tpu.memory_space<vmem>>, vector<1x1x8x8xf32>
    %76 = vector.shape_cast %75 : vector<1x1x8x8xf32> to vector<8x8xf32>
    %77 = vector.shape_cast %74 : vector<8x8xf32> to vector<1x1x8x8xf32>
    tpu.vector_store %arg7[%c0_31, %c3, %c0_32, %c0_33], %77 {strides = array<i32>} : memref<1x4x8x8xf32, #tpu.memory_space<vmem>>, vector<1x1x8x8xf32>,
    %78 = arith.truncf %74 : vector<8x8xf32> to vector<8x8xbf16>
    %cst_34 = arith.constant dense<0.000000e+00> : vector<8x8xf32>
    %79 = tpu.matmul %78, %64, %cst_34 {dimension_numbers = #tpu.dot_dimension_numbers<[1], [0], [0], [1], [0, 0, 1, 1], [], []>} : vector<8x8xbf16>, vector<8x8xbf16>, vector<8x8xf32> -> vector<8x8xf32>
    %80 = tpu.concatenate %25, %43, %61, %79 in 1 : vector<8x8xf32>, vector<8x8xf32>, vector<8x8xf32>, vector<8x8xf32> -> vector<8x32xf32>
    %81 = arith.truncf %80 : vector<8x32xf32> to vector<8x32xbf16>
    %c0_35 = arith.constant 0 : index
    %c0_36 = arith.constant 0 : index
    %82 = vector.load %arg4[%c0_35, %c0_36] : memref<32x32xbf16, #tpu.memory_space<vmem>>, vector<32x32xbf16>
    %cst_37 = arith.constant dense<0.000000e+00> : vector<8x32xf32>
    %83 = tpu.matmul %81, %82, %cst_37 {dimension_numbers = #tpu.dot_dimension_numbers<[1], [0], [0], [1], [0, 0, 1, 1], [], []>} : vector<8x32xbf16>, vector<32x32xbf16>, vector<8x32xf32> -> vector<8x32xf32>
    %c0_38 = arith.constant 0 : index
    %c0_39 = arith.constant 0 : index
    %84 = vector.load %arg5[%c0_38, %c0_39] : memref<1x32xf32, #tpu.memory_space<vmem>>, vector<1x32xf32>
    %85 = vector.broadcast %84 : vector<1x32xf32> to vector<8x32xf32>
    %86 = arith.addf %83, %85 : vector<8x32xf32>
    %c0_40 = arith.constant 0 : index
    %c0_41 = arith.constant 0 : index
    %c0_42 = arith.constant 0 : index
    %87 = vector.load %arg6[%c0_40, %c0_41, %c0_42] : memref<1x8x32xf32, #tpu.memory_space<vmem>>, vector<1x8x32xf32>
    %88 = vector.shape_cast %87 : vector<1x8x32xf32> to vector<8x32xf32>
    %89 = vector.shape_cast %86 : vector<8x32xf32> to vector<1x8x32xf32>
    tpu.vector_store %arg6[%c0_40, %c0_41, %c0_42], %89 {strides = array<i32>} : memref<1x8x32xf32, #tpu.memory_space<vmem>>, vector<1x8x32xf32>,
    return
  }
  func.func @transform_0(%arg0: i32) -> (i32, i32, i32) {
    %c0_i32 = arith.constant 0 : i32
    %c0_i32_0 = arith.constant 0 : i32
    %c0_i32_1 = arith.constant 0 : i32
    return %arg0, %c0_i32, %c0_i32_0 : i32, i32, i32
  }
  func.func @transform_1(%arg0: i32) -> (i32, i32) {
    %c0_i32 = arith.constant 0 : i32
    %c0_i32_0 = arith.constant 0 : i32
    %c0_i32_1 = arith.constant 0 : i32
    return %c0_i32, %c0_i32_0 : i32, i32
  }
  func.func @transform_2(%arg0: i32) -> (i32, i32) {
    %c0_i32 = arith.constant 0 : i32
    %c0_i32_0 = arith.constant 0 : i32
    %c0_i32_1 = arith.constant 0 : i32
    return %c0_i32, %c0_i32_0 : i32, i32
  }
  func.func @transform_3(%arg0: i32) -> (i32, i32) {
    %c0_i32 = arith.constant 0 : i32
    %c0_i32_0 = arith.constant 0 : i32
    %c0_i32_1 = arith.constant 0 : i32
    return %c0_i32, %c0_i32_0 : i32, i32
  }
  func.func @transform_4(%arg0: i32) -> (i32, i32) {
    %c0_i32 = arith.constant 0 : i32
    %c0_i32_0 = arith.constant 0 : i32
    %c0_i32_1 = arith.constant 0 : i32
    return %c0_i32, %c0_i32_0 : i32, i32
  }
  func.func @transform_5(%arg0: i32) -> (i32, i32, i32) {
    %c0_i32 = arith.constant 0 : i32
    %c0_i32_0 = arith.constant 0 : i32
    %c0_i32_1 = arith.constant 0 : i32
    return %arg0, %c0_i32, %c0_i32_0 : i32, i32, i32
  }
  func.func @transform_6(%arg0: i32) -> (i32, i32, i32, i32) {
    %c0_i32 = arith.constant 0 : i32
    %c0_i32_0 = arith.constant 0 : i32
    %c0_i32_1 = arith.constant 0 : i32
    %c0_i32_2 = arith.constant 0 : i32
    return %arg0, %c0_i32, %c0_i32_0, %c0_i32_1 : i32, i32, i32, i32
  }
}

</mosaic_0001>

<llo_original>
// kernel: tpu_custom_call.1
$region0: #{tpu_custom_call.1}
  #allocation0 [shape = 'u32[]', space=smem, size = 0x4, offset = 0x4, fixed_abs, tag = 'smem constant byte address 0x4 - core index']
  #allocation1 [shape = 'u32[144,128]{1,0:T(1,128)}', space=vmem, size = 0x12000, scoped, tag = 'internal scratch']
  %s0 = inlined_call_operand.hbm [shape: bf16[2,8,32], index: 0, kind: input, shape index: {}]
  %s1 = inlined_call_operand.hbm [shape: bf16[32,96], index: 1, kind: input, shape index: {}]
  %s2 = inlined_call_operand.vmem [shape: f32[1,96], index: 2, kind: input, shape index: {}]
  %s3 = inlined_call_operand.hbm [shape: bf16[32,32], index: 3, kind: input, shape index: {}]
  %s4 = inlined_call_operand.vmem [shape: f32[1,32], index: 4, kind: input, shape index: {}]
  %s5 = inlined_call_operand.hbm [shape: f32[2,8,32], index: 5, kind: output, shape index: {0}]
  %s6 = inlined_call_operand.hbm [shape: f32[2,4,8,8], index: 6, kind: output, shape index: {1}]
  %7 = xla_tuple %s5, %s6
  %s8 = sld [smem:[#allocation0]]
  $region73: #{tpu_custom_call.1} parent=0
    _
  %s10 = ssub.s32 1, %s8
  %s11 = scalar_select 0, %s10, %s8
  $region1: #{tpu_custom_call.1} parent=0
    #allocation2 [shape = 'u8[4096]{0}', space=vmem, size = 0x1000, scoped, tag = 'input window, operand 0']
    #allocation3 [shape = 's32[2]{0}', space=sflag, size = 0x8, scoped, tag = 'scoped memory for tpu_custom_call.1']
    #allocation4 [shape = 's32[2]{0}', space=sflag, size = 0x8, scoped, tag = 'scoped memory for tpu_custom_call.1']
    #allocation5 [shape = 'u8[8192]{0}', space=vmem, size = 0x2000, scoped, tag = 'input window, operand 1, single buffered']
    #allocation6 [shape = 's32[1]{0}', space=sflag, size = 0x4, scoped, tag = 'scoped memory for tpu_custom_call.1']
    #allocation7 [shape = 'u8[8192]{0}', space=vmem, size = 0x2000, scoped, tag = 'input window, operand 3, single buffered']
    #allocation8 [shape = 'u8[8192]{0}', space=vmem, size = 0x2000, scoped, tag = 'output window, operand 0']
    #allocation9 [shape = 'u8[32768]{0}', space=vmem, size = 0x8000, scoped, tag = 'output window, operand 1']
    #allocation10 [shape = 's32[2]{0}', space=sflag, size = 0x8, scoped, tag = 'scoped memory for tpu_custom_call.1']
    %12 = vsyncpa [#allocation3], 0
    %s13 = scalar_lea.sflag [#allocation3], 1
    %14 = vsyncpa %s13, 0
    %15 = vsyncpa [#allocation6], 0
    %16 = vsyncpa [#allocation4], 0
    %s17 = scalar_lea.sflag [#allocation4], 1
    %18 = vsyncpa %s17, 0
    %19 = vsyncpa [#allocation10], 0
    %s20 = scalar_lea.sflag [#allocation10], 1
    %21 = vsyncpa %s20, 0
    loop: start=0, step=1, limit=4
    $region2: #{tpu_custom_call.1} parent=1 // loop_pre_header
      _
    $region3: #{tpu_custom_call.1} parent=1 // loop_header
      %s23 = sphi 0, %s27
      %p24 = scmp.ge.s32.totalorder %s23, 4
      %s33 = sphi 0, %s35
      %s36 = sphi 0, %s33
      %s37 = sphi 0, %s36
      %s53 = sphi 0, %s37
      %s57 = sphi 0, %s57
      %s59 = sphi 0, %s57
      %s60 = sphi 0, %s59
      %s74 = sphi 0, %s60
      %s78 = sphi 0, %s78
      %s80 = sphi 0, %s78
      %s81 = sphi 0, %s80
      %s95 = sphi 0, %s81
      %s99 = sphi 0, %s99
      %s101 = sphi 0, %s99
      %s102 = sphi 0, %s101
      %s116 = sphi 0, %s102
      %s120 = sphi 0, %s120
      %s122 = sphi 0, %s120
      %s123 = sphi 0, %s122
      %s137 = sphi 0, %s123
      %s143 = sphi 0, %s145
      %s146 = sphi 0, %s143
      %s147 = sphi 0, %s146
      %s163 = sphi 0, %s147
      %s169 = sphi 0, %s171
      %s172 = sphi 0, %s169
      %s173 = sphi 0, %s172
      %s189 = sphi 0, %s173
    $region4: #{tpu_custom_call.1} parent=1 // loop_header_branch
      %26 = sbr.rel (%p24) target = $region8
    $region5: #{tpu_custom_call.1} parent=1 // loop_body
      %s28 = ssub.s32 %s23, 1
      %s29 = ssub.s32 %s23, 2
      %s30 = sadd.s32 %s23, 1
      %s31 = ssub.s32 %s23, %s30
      %p32 = scmp.eq.s32.totalorder %s31, 0
      %s34 = sadd.s32 %s33, 1
      %s35 = scalar_select %p32, %s33, %s34
      %p38 = pneg %p32
      %p39 = scmp.eq.s32.totalorder %s23, 1
      %p40 = por %p38, %p39
      %p41 = scmp.ne.s32.totalorder %s33, %s36
      %p42 = scmp.eq.s32.totalorder %s23, 0
      %p43 = por %p41, %p42
      %p44 = scmp.ne.s32.totalorder %s33, %s36
      %p45 = scmp.eq.s32.totalorder %s28, 1
      %p46 = por %p44, %p45
      %p47 = scmp.ne.s32.totalorder %s36, %s37
      %p48 = scmp.eq.s32.totalorder %s28, 0
      %p49 = por %p47, %p48
      %p50 = scmp.ne.s32.totalorder %s36, %s37
      %p51 = scmp.eq.s32.totalorder %s29, 1
      %p52 = por %p50, %p51
      %p54 = scmp.ne.s32.totalorder %s37, %s53
      %p55 = scmp.eq.s32.totalorder %s29, 0
      %p56 = por %p54, %p55
      %s58 = sadd.s32 %s57, 1
      %p61 = scmp.eq.s32.totalorder %s23, 1
      %p62 = scmp.ne.s32.totalorder %s57, %s59
      %p63 = scmp.eq.s32.totalorder %s23, 0
      %p64 = por %p62, %p63
      %p65 = scmp.ne.s32.totalorder %s57, %s59
      %p66 = scmp.eq.s32.totalorder %s28, 1
      %p67 = por %p65, %p66
      %p68 = scmp.ne.s32.totalorder %s59, %s60
      %p69 = scmp.eq.s32.totalorder %s28, 0
      %p70 = por %p68, %p69
      %p71 = scmp.ne.s32.totalorder %s59, %s60
      %p72 = scmp.eq.s32.totalorder %s29, 1
      %p73 = por %p71, %p72
      %p75 = scmp.ne.s32.totalorder %s60, %s74
      %p76 = scmp.eq.s32.totalorder %s29, 0
      %p77 = por %p75, %p76
      %s79 = sadd.s32 %s78, 1
      %p82 = scmp.eq.s32.totalorder %s23, 1
      %p83 = scmp.ne.s32.totalorder %s78, %s80
      %p84 = scmp.eq.s32.totalorder %s23, 0
      %p85 = por %p83, %p84
      %p86 = scmp.ne.s32.totalorder %s78, %s80
      %p87 = scmp.eq.s32.totalorder %s28, 1
      %p88 = por %p86, %p87
      %p89 = scmp.ne.s32.totalorder %s80, %s81
      %p90 = scmp.eq.s32.totalorder %s28, 0
      %p91 = por %p89, %p90
      %p92 = scmp.ne.s32.totalorder %s80, %s81
      %p93 = scmp.eq.s32.totalorder %s29, 1
      %p94 = por %p92, %p93
      %p96 = scmp.ne.s32.totalorder %s81, %s95
      %p97 = scmp.eq.s32.totalorder %s29, 0
      %p98 = por %p96, %p97
      %s100 = sadd.s32 %s99, 1
      %p103 = scmp.eq.s32.totalorder %s23, 1
      %p104 = scmp.ne.s32.totalorder %s99, %s101
      %p105 = scmp.eq.s32.totalorder %s23, 0
      %p106 = por %p104, %p105
      %p107 = scmp.ne.s32.totalorder %s99, %s101
      %p108 = scmp.eq.s32.totalorder %s28, 1
      %p109 = por %p107, %p108
      %p110 = scmp.ne.s32.totalorder %s101, %s102
      %p111 = scmp.eq.s32.totalorder %s28, 0
      %p112 = por %p110, %p111
      %p113 = scmp.ne.s32.totalorder %s101, %s102
      %p114 = scmp.eq.s32.totalorder %s29, 1
      %p115 = por %p113, %p114
      %p117 = scmp.ne.s32.totalorder %s102, %s116
      %p118 = scmp.eq.s32.totalorder %s29, 0
      %p119 = por %p117, %p118
      %s121 = sadd.s32 %s120, 1
      %p124 = scmp.eq.s32.totalorder %s23, 1
      %p125 = scmp.ne.s32.totalorder %s120, %s122
      %p126 = scmp.eq.s32.totalorder %s23, 0
      %p127 = por %p125, %p126
      %p128 = scmp.ne.s32.totalorder %s120, %s122
      %p129 = scmp.eq.s32.totalorder %s28, 1
      %p130 = por %p128, %p129
      %p131 = scmp.ne.s32.totalorder %s122, %s123
      %p132 = scmp.eq.s32.totalorder %s28, 0
      %p133 = por %p131, %p132
      %p134 = scmp.ne.s32.totalorder %s122, %s123
      %p135 = scmp.eq.s32.totalorder %s29, 1
      %p136 = por %p134, %p135
      %p138 = scmp.ne.s32.totalorder %s123, %s137
      %p139 = scmp.eq.s32.totalorder %s29, 0
      %p140 = por %p138, %p139
      %s141 = ssub.s32 %s23, %s30
      %p142 = scmp.eq.s32.totalorder %s141, 0
      %s144 = sadd.s32 %s143, 1
      %s145 = scalar_select %p142, %s143, %s144
      %p148 = pneg %p142
      %p149 = scmp.eq.s32.totalorder %s23, 1
      %p150 = por %p148, %p149
      %p151 = scmp.ne.s32.totalorder %s143, %s146
      %p152 = scmp.eq.s32.totalorder %s23, 0
      %p153 = por %p151, %p152
      %p154 = scmp.ne.s32.totalorder %s143, %s146
      %p155 = scmp.eq.s32.totalorder %s28, 1
      %p156 = por %p154, %p155
      %p157 = scmp.ne.s32.totalorder %s146, %s147
      %p158 = scmp.eq.s32.totalorder %s28, 0
      %p159 = por %p157, %p158
      %p160 = scmp.ne.s32.totalorder %s146, %s147
      %p161 = scmp.eq.s32.totalorder %s29, 1
      %p162 = por %p160, %p161
      %p164 = scmp.ne.s32.totalorder %s147, %s163
      %p165 = scmp.eq.s32.totalorder %s29, 0
      %p166 = por %p164, %p165
      %s167 = ssub.s32 %s23, %s30
      %p168 = scmp.eq.s32.totalorder %s167, 0
      %s170 = sadd.s32 %s169, 1
      %s171 = scalar_select %p168, %s169, %s170
      %p174 = pneg %p168
      %p175 = scmp.eq.s32.totalorder %s23, 1
      %p176 = por %p174, %p175
      %p177 = scmp.ne.s32.totalorder %s169, %s172
      %p178 = scmp.eq.s32.totalorder %s23, 0
      %p179 = por %p177, %p178
      %p180 = scmp.ne.s32.totalorder %s169, %s172
      %p181 = scmp.eq.s32.totalorder %s28, 1
      %p182 = por %p180, %p181
      %p183 = scmp.ne.s32.totalorder %s172, %s173
      %p184 = scmp.eq.s32.totalorder %s28, 0
      %p185 = por %p183, %p184
      %p186 = scmp.ne.s32.totalorder %s172, %s173
      %p187 = scmp.eq.s32.totalorder %s29, 1
      %p188 = por %p186, %p187
      %p190 = scmp.ne.s32.totalorder %s173, %s189
      %p191 = scmp.eq.s32.totalorder %s29, 0
      %p192 = por %p190, %p191
      %p193 = scmp.le.s32.totalorder 1, %s23
      %p194 = scmp.lt.s32.totalorder %s23, 3
      %p195 = pnand %p193, %p194
      %p196 = pneg %p195
      // Predicated region
      $region9: #{tpu_custom_call.1} parent=5 // pred_check
        _
      $region10: #{tpu_custom_call.1} parent=5 // pred_check_branch
        %198 = sbr.rel (%p195) target = $region12
      $region11: #{tpu_custom_call.1} parent=5 // pred_region
        %s199 = ssub.s32 %s23, 1
        // Predicated region
        $region13: #{tpu_custom_call.1} parent=11 // pred_check
          %p200 = pneg %p70
        $region14: #{tpu_custom_call.1} parent=11 // pred_check_branch
          %202 = sbr.rel (%p200) target = $region16
        $region15: #{tpu_custom_call.1} parent=11 // pred_region
          %s204 = ssub.s32 256, 256
          %205 = vsyncadd [#allocation6], %s204
          %s206 = sshll.u32 [#allocation5], 4
          %s207 = int_to_ptr.vmem [resolvable:$true] %s206
          %212 = dma.hbm_to_vmem [thread:$0]  %s1, 256, %s207, [#allocation6], 64, 64, 4
        $region16: #{tpu_custom_call.1} parent=11 // pred_fallthru
          _
        // Predicated region
        $region17: #{tpu_custom_call.1} parent=11 // pred_check
          %p213 = pneg %p91
        $region18: #{tpu_custom_call.1} parent=11 // pred_check_branch
          %215 = sbr.rel (%p213) target = $region20
        $region19: #{tpu_custom_call.1} parent=11 // pred_region
          _
        $region20: #{tpu_custom_call.1} parent=11 // pred_fallthru
          _
        // Predicated region
        $region21: #{tpu_custom_call.1} parent=11 // pred_check
          %p216 = pneg %p112
        $region22: #{tpu_custom_call.1} parent=11 // pred_check_branch
          %218 = sbr.rel (%p216) target = $region24
        $region23: #{tpu_custom_call.1} parent=11 // pred_region
          %s220 = ssub.s32 256, 256
          %221 = vsyncadd [#allocation6], %s220
          %s222 = sshll.u32 [#allocation7], 4
          %s223 = int_to_ptr.vmem [resolvable:$true] %s222
          %228 = dma.hbm_to_vmem [thread:$0]  %s3, 256, %s223, [#allocation6], 64, 64, 4
        $region24: #{tpu_custom_call.1} parent=11 // pred_fallthru
          _
        // Predicated region
        $region25: #{tpu_custom_call.1} parent=11 // pred_check
          %p229 = pneg %p133
        $region26: #{tpu_custom_call.1} parent=11 // pred_check_branch
          %231 = sbr.rel (%p229) target = $region28
        $region27: #{tpu_custom_call.1} parent=11 // pred_region
          _
        $region28: #{tpu_custom_call.1} parent=11 // pred_fallthru
          _
      $region12: #{tpu_custom_call.1} parent=5 // pred_fallthru
        _
      %p232 = scmp.lt.s32.totalorder %s23, 2
      // Predicated region
      $region29: #{tpu_custom_call.1} parent=5 // pred_check
        %p233 = pneg %p232
      $region30: #{tpu_custom_call.1} parent=5 // pred_check_branch
        %235 = sbr.rel (%p233) target = $region32
      $region31: #{tpu_custom_call.1} parent=5 // pred_region
        // Predicated region
        $region33: #{tpu_custom_call.1} parent=31 // pred_check
          %p236 = pneg %p43
        $region34: #{tpu_custom_call.1} parent=31 // pred_check_branch
          %238 = sbr.rel (%p236) target = $region36
        $region35: #{tpu_custom_call.1} parent=31 // pred_region
          %s239 = sand.u32 %s33, 1
          %s240 = scalar_lea.sflag [#allocation3], %s239
          %s241 = sand.u32 %s33, 1
          %s242 = smul.addr %s241, 4
          %s243 = scalar_lea.vmem [#allocation2], %s242
          %s245 = ssub.s32 64, 64
          %246 = vsyncadd %s240, %s245
          %s247 = smul.addr %s23, 64
          %s248 = scalar_lea.hbm %s0, %s247
          %s250 = sshll.u32 %s243, 4
          %s251 = int_to_ptr.vmem [resolvable:$true] %s250
          %253 = dma.hbm_to_vmem [thread:$0]  %s248, 64, %s251, %s240
        $region36: #{tpu_custom_call.1} parent=31 // pred_fallthru
          _
      $region32: #{tpu_custom_call.1} parent=5 // pred_fallthru
        _
      %p254 = scmp.le.s32.totalorder 1, %s23
      %p255 = scmp.lt.s32.totalorder %s23, 3
      %p256 = pnand %p254, %p255
      %p257 = pneg %p256
      // Predicated region
      $region37: #{tpu_custom_call.1} parent=5 // pred_check
        _
      $region38: #{tpu_custom_call.1} parent=5 // pred_check_branch
        %259 = sbr.rel (%p256) target = $region40
      $region39: #{tpu_custom_call.1} parent=5 // pred_region
        %s260 = ssub.s32 %s23, 1
        %s261 = sand.u32 %s36, 1
        %s262 = scalar_lea.sflag [#allocation3], %s261
        %s263 = sand.u32 %s36, 1
        %s264 = smul.addr %s263, 4
        %s265 = scalar_lea.vmem [#allocation2], %s264
        // Predicated region
        $region41: #{tpu_custom_call.1} parent=39 // pred_check
          %p266 = pneg %p49
        $region42: #{tpu_custom_call.1} parent=39 // pred_check_branch
          %268 = sbr.rel (%p266) target = $region44
        $region43: #{tpu_custom_call.1} parent=39 // pred_region
          %269 = dma.done %s262, 64
        $region44: #{tpu_custom_call.1} parent=39 // pred_fallthru
          _
        // Predicated region
        $region45: #{tpu_custom_call.1} parent=39 // pred_check
          %p270 = pneg %p70
        $region46: #{tpu_custom_call.1} parent=39 // pred_check_branch
          %272 = sbr.rel (%p270) target = $region48
        $region47: #{tpu_custom_call.1} parent=39 // pred_region
          %273 = dma.done [#allocation6], 256
        $region48: #{tpu_custom_call.1} parent=39 // pred_fallthru
          _
        // Predicated region
        $region49: #{tpu_custom_call.1} parent=39 // pred_check
          %p274 = pneg %p112
        $region50: #{tpu_custom_call.1} parent=39 // pred_check_branch
          %276 = sbr.rel (%p274) target = $region52
        $region51: #{tpu_custom_call.1} parent=39 // pred_region
          %277 = dma.done [#allocation6], 256
        $region52: #{tpu_custom_call.1} parent=39 // pred_fallthru
          _
        %s278 = sand.u32 %s36, 1
        %s279 = scalar_lea.sflag [#allocation3], %s278
        %s280 = sand.u32 %s36, 1
        %s281 = smul.addr %s280, 4
        %s282 = scalar_lea.vmem [#allocation2], %s281
        %p283 = pneg %p49
        %p284 = pneg %p46
        %p285 = pneg %p70
        %p286 = pneg %p67
        %p287 = pneg %p91
        %p288 = pneg %p88
        %p289 = pneg %p112
        %p290 = pneg %p109
        %p291 = pneg %p133
        %p292 = pneg %p130
        %p293 = pneg %p159
        %p294 = pneg %p156
        %s295 = sand.u32 %s146, 1
        %s296 = scalar_lea.sflag [#allocation4], %s295
        %s297 = sand.u32 %s146, 1
        %s298 = smul.addr %s297, 8
        %s299 = scalar_lea.vmem [#allocation8], %s298
        %p300 = pneg %p185
        %p301 = pneg %p182
        %s302 = sand.u32 %s172, 1
        %s303 = scalar_lea.sflag [#allocation10], %s302
        %s304 = sand.u32 %s172, 1
        %s305 = smul.addr %s304, 32
        %s306 = scalar_lea.vmem [#allocation9], %s305
        %v308 = vld [vmem:[%s265] sm:$0xf]
        %v309 = vld [vmem:[#allocation5] sm:$0xf]
        %v310 = vld [vmem:[#allocation5 + $0x4] sm:$0xf]
        %v311 = vld [vmem:[#allocation5 + $0x8] sm:$0xf]
        %v312 = vld [vmem:[#allocation5 + $0xc] sm:$0xf]
        %v313 = vld [vmem:[%s2] sm:$0x1]
        %v315 = vlaneseq
        %v316 = vshrl.u32 %v315, 7
        %v317 = vsub.s32 0, %v316
        %v318 = vrot.slane %v313, %v317
        %v324 = vunpack.c.l.b16 %v309
        %v325 = vunpack.c.l.b16 %v310
        %v326 = vunpack.c.l.b16 %v311
        %v327 = vunpack.c.l.b16 %v312
        %v328 = vpack.c.b16 %v325, %v324
        %v329 = vpack.c.b16 %v327, %v326
        %vm332 = vcmask 261120
        %v334 = vsel %vm332, %v308, 0
        %336 = vmatprep.subr.bf16.mxu0 0
        %337 = vmatpush1.bf16.msra.mxu0 0
        %338 = vmatprep.subr.bf16.mxu0 0
        %339 = vmatpush1.bf16.msra.mxu0 0
        %340 = vmatprep.subr.bf16.mxu0 0
        %341 = vmatpush1.bf16.msra.mxu0 0
        %342 = vmatprep.subr.bf16.mxu0 0
        %343 = vmatpush1.bf16.msra.mxu0 0
        %344 = vmatprep.subr.bf16.mxu0 0
        %345 = vmatpush1.bf16.msra.mxu0 0
        %346 = vmatprep.subr.bf16.mxu0 0
        %347 = vmatpush1.bf16.msra.mxu0 0
        %348 = vmatprep.subr.bf16.mxu0 0
        %349 = vmatpush1.bf16.msra.mxu0 %v329
        %350 = vmatprep.subr.bf16.mxu0 0
        %351 = vmatpush1.bf16.msra.mxu0 %v328
        %352 = vmatprep.subr.bf16.mxu0 0
        %353 = vmatpush2.bf16.msra.mxu0 0
        %354 = vmatprep.subr.bf16.mxu0 0
        %355 = vmatpush2.bf16.msra.mxu0 0
        %356 = vmatprep.subr.bf16.mxu0 0
        %357 = vmatpush2.bf16.msra.mxu0 0
        %358 = vmatprep.subr.bf16.mxu0 0
        %359 = vmatpush2.bf16.msra.mxu0 0
        %360 = vmatprep.subr.bf16.mxu0 0
        %361 = vmatpush2.bf16.msra.mxu0 0
        %362 = vmatprep.subr.bf16.mxu0 0
        %363 = vmatpush2.bf16.msra.mxu0 0
        %364 = vmatprep.subr.bf16.mxu0 0
        %365 = vmatpush2.bf16.msra.mxu0 0
        %366 = vmatprep.subr.bf16.mxu0 0
        %367 = vmatpush2.bf16.msra.mxu0 0
        %368 = vmatprep.mubr.bf16.mxu0 0
        %369 = vmatmul.mubr.bf16.gmra.mxu0 %v334
        %v370 = vpop.f32.mrf.mxu0
        %v371 = vadd.f32 %v318, %v370
        %v372 = vpop.f32.mrf.mxu0
        %v373 = vpop.f32.mrf.mxu0
        %v374 = vpop.f32.mrf.mxu0
        %375 = vdwg.mxu0
        %v376 = vpack.c.bf16 %v371, %v371
        %378 = vrot.lane.b32.xlu0 %v376, 96
        %v379 = vpop.permute.xlu0 %378
        %vm380 = vcmask 64512
        %v382 = vsel %vm380, %v376, 0
        %v385 = vsel %vm380, %v379, 0
        %387 = vmatprep.subr.bf16.mxu0 0
        %388 = vmatpush1.bf16.xpose.msra.mxu0 0
        %389 = vmatprep.subr.bf16.mxu0 0
        %390 = vmatpush1.bf16.xpose.msra.mxu0 0
        %391 = vmatprep.subr.bf16.mxu0 0
        %392 = vmatpush1.bf16.xpose.msra.mxu0 0
        %393 = vmatprep.subr.bf16.mxu0 0
        %394 = vmatpush1.bf16.xpose.msra.mxu0 0
        %395 = vmatprep.subr.bf16.mxu0 0
        %396 = vmatpush1.bf16.xpose.msra.mxu0 0
        %397 = vmatprep.subr.bf16.mxu0 0
        %398 = vmatpush1.bf16.xpose.msra.mxu0 0
        %399 = vmatprep.subr.bf16.mxu0 0
        %400 = vmatpush1.bf16.xpose.msra.mxu0 0
        %401 = vmatprep.subr.bf16.mxu0 0
        %402 = vmatpush1.bf16.xpose.msra.mxu0 %v385
        %403 = vmatprep.subr.bf16.mxu0 0
        %404 = vmatpush2.bf16.xpose.msra.mxu0 0
        %405 = vmatprep.subr.bf16.mxu0 0
        %406 = vmatpush2.bf16.xpose.msra.mxu0 0
        %407 = vmatprep.subr.bf16.mxu0 0
        %408 = vmatpush2.bf16.xpose.msra.mxu0 0
        %409 = vmatprep.subr.bf16.mxu0 0
        %410 = vmatpush2.bf16.xpose.msra.mxu0 0
        %411 = vmatprep.subr.bf16.mxu0 0
        %412 = vmatpush2.bf16.xpose.msra.mxu0 0
        %413 = vmatprep.subr.bf16.mxu0 0
        %414 = vmatpush2.bf16.xpose.msra.mxu0 0
        %415 = vmatprep.subr.bf16.mxu0 0
        %416 = vmatpush2.bf16.xpose.msra.mxu0 0
        %417 = vmatprep.subr.bf16.mxu0 0
        %418 = vmatpush2.bf16.xpose.msra.mxu0 0
        %419 = vmatprep.mubr.bf16.mxu0 0
        %420 = vmatmul.mubr.bf16.gmra.mxu0 %v382
        %v421 = vpop.f32.mrf.mxu0
        %v422 = vadd.f32 0.0, %v421
        %v423 = vpop.f32.mrf.mxu0
        %v424 = vpop.f32.mrf.mxu0
        %v425 = vpop.f32.mrf.mxu0
        %426 = vdwg.mxu0
        %v427 = vsel %vm380, %v422, -inf
        %428 = vmax.xlane.f32.xlu0 %v427
        %v429 = vpop.xlane.xlu0 %428
        %v430 = vsub.f32 %v422, %v429
        %v431 = vmul.f32 %v430, 1.442695
        %v432 = vpow.pop %v431
        %v433 = vsel %vm380, %v432, 0.0
        %434 = vadd.xlane.f32.xlu0 %v433
        %v435 = vpop.xlane.xlu0 %434
        %v436 = vrcp.pop %v435
        %v437 = vmul.f32 %v432, %v436
        %438 = vst.msk [vmem:[%s306] sm:$0xff] %vm380, %v437
        %v439 = vpack.c.bf16 %v437, %v437
        %440 = vrot.lane.b32.xlu0 %v376, 64
        %v441 = vpop.permute.xlu0 %440
        %v443 = vsel %vm380, %v439, 0
        %vm445 = vcmask 1043456
        %v447 = vsel %vm445, %v441, 0
        %449 = vmatprep.subr.bf16.mxu0 0
        %450 = vmatpush1.bf16.msra.mxu0 0
        %451 = vmatprep.subr.bf16.mxu0 0
        %452 = vmatpush1.bf16.msra.mxu0 0
        %453 = vmatprep.subr.bf16.mxu0 0
        %454 = vmatpush1.bf16.msra.mxu0 0
        %455 = vmatprep.subr.bf16.mxu0 0
        %456 = vmatpush1.bf16.msra.mxu0 0
        %457 = vmatprep.subr.bf16.mxu0 0
        %458 = vmatpush1.bf16.msra.mxu0 0
        %459 = vmatprep.subr.bf16.mxu0 0
        %460 = vmatpush1.bf16.msra.mxu0 0
        %461 = vmatprep.subr.bf16.mxu0 0
        %462 = vmatpush1.bf16.msra.mxu0 0
        %463 = vmatprep.subr.bf16.mxu0 0
        %464 = vmatpush1.bf16.msra.mxu0 %v447
        %465 = vmatprep.subr.bf16.mxu0 0
        %466 = vmatpush2.bf16.msra.mxu0 0
        %467 = vmatprep.subr.bf16.mxu0 0
        %468 = vmatpush2.bf16.msra.mxu0 0
        %469 = vmatprep.subr.bf16.mxu0 0
        %470 = vmatpush2.bf16.msra.mxu0 0
        %471 = vmatprep.subr.bf16.mxu0 0
        %472 = vmatpush2.bf16.msra.mxu0 0
        %473 = vmatprep.subr.bf16.mxu0 0
        %474 = vmatpush2.bf16.msra.mxu0 0
        %475 = vmatprep.subr.bf16.mxu0 0
        %476 = vmatpush2.bf16.msra.mxu0 0
        %477 = vmatprep.subr.bf16.mxu0 0
        %478 = vmatpush2.bf16.msra.mxu0 0
        %479 = vmatprep.subr.bf16.mxu0 0
        %480 = vmatpush2.bf16.msra.mxu0 0
        %481 = vmatprep.mubr.bf16.mxu0 0
        %482 = vmatmul.mubr.bf16.gmra.mxu0 %v443
        %v483 = vpop.f32.mrf.mxu0
        %v484 = vadd.f32 0.0, %v483
        %v485 = vpop.f32.mrf.mxu0
        %v486 = vpop.f32.mrf.mxu0
        %v487 = vpop.f32.mrf.mxu0
        %488 = vdwg.mxu0
        %489 = vrot.lane.b32.xlu0 %v376, 120
        %v490 = vpop.permute.xlu0 %489
        %491 = vrot.lane.b32.xlu0 %v376, 88
        %v492 = vpop.permute.xlu0 %491
        %v494 = vsel %vm380, %v490, 0
        %v497 = vsel %vm380, %v492, 0
        %499 = vmatprep.subr.bf16.mxu0 0
        %500 = vmatpush1.bf16.xpose.msra.mxu0 0
        %501 = vmatprep.subr.bf16.mxu0 0
        %502 = vmatpush1.bf16.xpose.msra.mxu0 0
        %503 = vmatprep.subr.bf16.mxu0 0
        %504 = vmatpush1.bf16.xpose.msra.mxu0 0
        %505 = vmatprep.subr.bf16.mxu0 0
        %506 = vmatpush1.bf16.xpose.msra.mxu0 0
        %507 = vmatprep.subr.bf16.mxu0 0
        %508 = vmatpush1.bf16.xpose.msra.mxu0 0
        %509 = vmatprep.subr.bf16.mxu0 0
        %510 = vmatpush1.bf16.xpose.msra.mxu0 0
        %511 = vmatprep.subr.bf16.mxu0 0
        %512 = vmatpush1.bf16.xpose.msra.mxu0 0
        %513 = vmatprep.subr.bf16.mxu0 0
        %514 = vmatpush1.bf16.xpose.msra.mxu0 %v497
        %515 = vmatprep.subr.bf16.mxu0 0
        %516 = vmatpush2.bf16.xpose.msra.mxu0 0
        %517 = vmatprep.subr.bf16.mxu0 0
        %518 = vmatpush2.bf16.xpose.msra.mxu0 0
        %519 = vmatprep.subr.bf16.mxu0 0
        %520 = vmatpush2.bf16.xpose.msra.mxu0 0
        %521 = vmatprep.subr.bf16.mxu0 0
        %522 = vmatpush2.bf16.xpose.msra.mxu0 0
        %523 = vmatprep.subr.bf16.mxu0 0
        %524 = vmatpush2.bf16.xpose.msra.mxu0 0
        %525 = vmatprep.subr.bf16.mxu0 0
        %526 = vmatpush2.bf16.xpose.msra.mxu0 0
        %527 = vmatprep.subr.bf16.mxu0 0
        %528 = vmatpush2.bf16.xpose.msra.mxu0 0
        %529 = vmatprep.subr.bf16.mxu0 0
        %530 = vmatpush2.bf16.xpose.msra.mxu0 0
        %531 = vmatprep.mubr.bf16.mxu0 0
        %532 = vmatmul.mubr.bf16.gmra.mxu0 %v494
        %v533 = vpop.f32.mrf.mxu0
        %v534 = vadd.f32 0.0, %v533
        %v535 = vpop.f32.mrf.mxu0
        %v536 = vpop.f32.mrf.mxu0
        %v537 = vpop.f32.mrf.mxu0
        %538 = vdwg.mxu0
        %v539 = vsel %vm380, %v534, -inf
        %540 = vmax.xlane.f32.xlu0 %v539
        %v541 = vpop.xlane.xlu0 %540
        %v542 = vsub.f32 %v534, %v541
        %v543 = vmul.f32 %v542, 1.442695
        %v544 = vpow.pop %v543
        %v545 = vsel %vm380, %v544, 0.0
        %546 = vadd.xlane.f32.xlu0 %v545
        %v547 = vpop.xlane.xlu0 %546
        %v548 = vrcp.pop %v547
        %v549 = vmul.f32 %v544, %v548
        %s550 = scalar_lea.vmem %s306, 8 [#allocation9]
        %551 = vst.msk [vmem:[%s550] sm:$0xff] %vm380, %v549
        %v552 = vpack.c.bf16 %v549, %v549
        %553 = vrot.lane.b32.xlu0 %v376, 56
        %v554 = vpop.permute.xlu0 %553
        %v556 = vsel %vm380, %v552, 0
        %v559 = vsel %vm445, %v554, 0
        %561 = vmatprep.subr.bf16.mxu0 0
        %562 = vmatpush1.bf16.msra.mxu0 0
        %563 = vmatprep.subr.bf16.mxu0 0
        %564 = vmatpush1.bf16.msra.mxu0 0
        %565 = vmatprep.subr.bf16.mxu0 0
        %566 = vmatpush1.bf16.msra.mxu0 0
        %567 = vmatprep.subr.bf16.mxu0 0
        %568 = vmatpush1.bf16.msra.mxu0 0
        %569 = vmatprep.subr.bf16.mxu0 0
        %570 = vmatpush1.bf16.msra.mxu0 0
        %571 = vmatprep.subr.bf16.mxu0 0
        %572 = vmatpush1.bf16.msra.mxu0 0
        %573 = vmatprep.subr.bf16.mxu0 0
        %574 = vmatpush1.bf16.msra.mxu0 0
        %575 = vmatprep.subr.bf16.mxu0 0
        %576 = vmatpush1.bf16.msra.mxu0 %v559
        %577 = vmatprep.subr.bf16.mxu0 0
        %578 = vmatpush2.bf16.msra.mxu0 0
        %579 = vmatprep.subr.bf16.mxu0 0
        %580 = vmatpush2.bf16.msra.mxu0 0
        %581 = vmatprep.subr.bf16.mxu0 0
        %582 = vmatpush2.bf16.msra.mxu0 0
        %583 = vmatprep.subr.bf16.mxu0 0
        %584 = vmatpush2.bf16.msra.mxu0 0
        %585 = vmatprep.subr.bf16.mxu0 0
        %586 = vmatpush2.bf16.msra.mxu0 0
        %587 = vmatprep.subr.bf16.mxu0 0
        %588 = vmatpush2.bf16.msra.mxu0 0
        %589 = vmatprep.subr.bf16.mxu0 0
        %590 = vmatpush2.bf16.msra.mxu0 0
        %591 = vmatprep.subr.bf16.mxu0 0
        %592 = vmatpush2.bf16.msra.mxu0 0
        %593 = vmatprep.mubr.bf16.mxu0 0
        %594 = vmatmul.mubr.bf16.gmra.mxu0 %v556
        %v595 = vpop.f32.mrf.mxu0
        %v596 = vadd.f32 0.0, %v595
        %v597 = vpop.f32.mrf.mxu0
        %v598 = vpop.f32.mrf.mxu0
        %v599 = vpop.f32.mrf.mxu0
        %600 = vdwg.mxu0
        %601 = vrot.lane.b32.xlu0 %v376, 112
        %v602 = vpop.permute.xlu0 %601
        %603 = vrot.lane.b32.xlu0 %v376, 80
        %v604 = vpop.permute.xlu0 %603
        %v606 = vsel %vm380, %v602, 0
        %v609 = vsel %vm380, %v604, 0
        %611 = vmatprep.subr.bf16.mxu0 0
        %612 = vmatpush1.bf16.xpose.msra.mxu0 0
        %613 = vmatprep.subr.bf16.mxu0 0
        %614 = vmatpush1.bf16.xpose.msra.mxu0 0
        %615 = vmatprep.subr.bf16.mxu0 0
        %616 = vmatpush1.bf16.xpose.msra.mxu0 0
        %617 = vmatprep.subr.bf16.mxu0 0
        %618 = vmatpush1.bf16.xpose.msra.mxu0 0
        %619 = vmatprep.subr.bf16.mxu0 0
        %620 = vmatpush1.bf16.xpose.msra.mxu0 0
        %621 = vmatprep.subr.bf16.mxu0 0
        %622 = vmatpush1.bf16.xpose.msra.mxu0 0
        %623 = vmatprep.subr.bf16.mxu0 0
        %624 = vmatpush1.bf16.xpose.msra.mxu0 0
        %625 = vmatprep.subr.bf16.mxu0 0
        %626 = vmatpush1.bf16.xpose.msra.mxu0 %v609
        %627 = vmatprep.subr.bf16.mxu0 0
        %628 = vmatpush2.bf16.xpose.msra.mxu0 0
        %629 = vmatprep.subr.bf16.mxu0 0
        %630 = vmatpush2.bf16.xpose.msra.mxu0 0
        %631 = vmatprep.subr.bf16.mxu0 0
        %632 = vmatpush2.bf16.xpose.msra.mxu0 0
        %633 = vmatprep.subr.bf16.mxu0 0
        %634 = vmatpush2.bf16.xpose.msra.mxu0 0
        %635 = vmatprep.subr.bf16.mxu0 0
        %636 = vmatpush2.bf16.xpose.msra.mxu0 0
        %637 = vmatprep.subr.bf16.mxu0 0
        %638 = vmatpush2.bf16.xpose.msra.mxu0 0
        %639 = vmatprep.subr.bf16.mxu0 0
        %640 = vmatpush2.bf16.xpose.msra.mxu0 0
        %641 = vmatprep.subr.bf16.mxu0 0
        %642 = vmatpush2.bf16.xpose.msra.mxu0 0
        %643 = vmatprep.mubr.bf16.mxu0 0
        %644 = vmatmul.mubr.bf16.gmra.mxu0 %v606
        %v645 = vpop.f32.mrf.mxu0
        %v646 = vadd.f32 0.0, %v645
        %v647 = vpop.f32.mrf.mxu0
        %v648 = vpop.f32.mrf.mxu0
        %v649 = vpop.f32.mrf.mxu0
        %650 = vdwg.mxu0
        %v651 = vsel %vm380, %v646, -inf
        %652 = vmax.xlane.f32.xlu0 %v651
        %v653 = vpop.xlane.xlu0 %652
        %v654 = vsub.f32 %v646, %v653
        %v655 = vmul.f32 %v654, 1.442695
        %v656 = vpow.pop %v655
        %v657 = vsel %vm380, %v656, 0.0
        %658 = vadd.xlane.f32.xlu0 %v657
        %v659 = vpop.xlane.xlu0 %658
        %v660 = vrcp.pop %v659
        %v661 = vmul.f32 %v656, %v660
        %s662 = scalar_lea.vmem %s306, 16 [#allocation9]
        %663 = vst.msk [vmem:[%s662] sm:$0xff] %vm380, %v661
        %v664 = vpack.c.bf16 %v661, %v661
        %665 = vrot.lane.b32.xlu0 %v376, 48
        %v666 = vpop.permute.xlu0 %665
        %v668 = vsel %vm380, %v664, 0
        %v671 = vsel %vm445, %v666, 0
        %673 = vmatprep.subr.bf16.mxu0 0
        %674 = vmatpush1.bf16.msra.mxu0 0
        %675 = vmatprep.subr.bf16.mxu0 0
        %676 = vmatpush1.bf16.msra.mxu0 0
        %677 = vmatprep.subr.bf16.mxu0 0
        %678 = vmatpush1.bf16.msra.mxu0 0
        %679 = vmatprep.subr.bf16.mxu0 0
        %680 = vmatpush1.bf16.msra.mxu0 0
        %681 = vmatprep.subr.bf16.mxu0 0
        %682 = vmatpush1.bf16.msra.mxu0 0
        %683 = vmatprep.subr.bf16.mxu0 0
        %684 = vmatpush1.bf16.msra.mxu0 0
        %685 = vmatprep.subr.bf16.mxu0 0
        %686 = vmatpush1.bf16.msra.mxu0 0
        %687 = vmatprep.subr.bf16.mxu0 0
        %688 = vmatpush1.bf16.msra.mxu0 %v671
        %689 = vmatprep.subr.bf16.mxu0 0
        %690 = vmatpush2.bf16.msra.mxu0 0
        %691 = vmatprep.subr.bf16.mxu0 0
        %692 = vmatpush2.bf16.msra.mxu0 0
        %693 = vmatprep.subr.bf16.mxu0 0
        %694 = vmatpush2.bf16.msra.mxu0 0
        %695 = vmatprep.subr.bf16.mxu0 0
        %696 = vmatpush2.bf16.msra.mxu0 0
        %697 = vmatprep.subr.bf16.mxu0 0
        %698 = vmatpush2.bf16.msra.mxu0 0
        %699 = vmatprep.subr.bf16.mxu0 0
        %700 = vmatpush2.bf16.msra.mxu0 0
        %701 = vmatprep.subr.bf16.mxu0 0
        %702 = vmatpush2.bf16.msra.mxu0 0
        %703 = vmatprep.subr.bf16.mxu0 0
        %704 = vmatpush2.bf16.msra.mxu0 0
        %705 = vmatprep.mubr.bf16.mxu0 0
        %706 = vmatmul.mubr.bf16.gmra.mxu0 %v668
        %v707 = vpop.f32.mrf.mxu0
        %v708 = vadd.f32 0.0, %v707
        %v709 = vpop.f32.mrf.mxu0
        %v710 = vpop.f32.mrf.mxu0
        %v711 = vpop.f32.mrf.mxu0
        %712 = vdwg.mxu0
        %713 = vrot.lane.b32.xlu0 %v376, 104
        %v714 = vpop.permute.xlu0 %713
        %715 = vrot.lane.b32.xlu0 %v376, 72
        %v716 = vpop.permute.xlu0 %715
        %v718 = vsel %vm380, %v714, 0
        %v721 = vsel %vm380, %v716, 0
        %723 = vmatprep.subr.bf16.mxu0 0
        %724 = vmatpush1.bf16.xpose.msra.mxu0 0
        %725 = vmatprep.subr.bf16.mxu0 0
        %726 = vmatpush1.bf16.xpose.msra.mxu0 0
        %727 = vmatprep.subr.bf16.mxu0 0
        %728 = vmatpush1.bf16.xpose.msra.mxu0 0
        %729 = vmatprep.subr.bf16.mxu0 0
        %730 = vmatpush1.bf16.xpose.msra.mxu0 0
        %731 = vmatprep.subr.bf16.mxu0 0
        %732 = vmatpush1.bf16.xpose.msra.mxu0 0
        %733 = vmatprep.subr.bf16.mxu0 0
        %734 = vmatpush1.bf16.xpose.msra.mxu0 0
        %735 = vmatprep.subr.bf16.mxu0 0
        %736 = vmatpush1.bf16.xpose.msra.mxu0 0
        %737 = vmatprep.subr.bf16.mxu0 0
        %738 = vmatpush1.bf16.xpose.msra.mxu0 %v721
        %739 = vmatprep.subr.bf16.mxu0 0
        %740 = vmatpush2.bf16.xpose.msra.mxu0 0
        %741 = vmatprep.subr.bf16.mxu0 0
        %742 = vmatpush2.bf16.xpose.msra.mxu0 0
        %743 = vmatprep.subr.bf16.mxu0 0
        %744 = vmatpush2.bf16.xpose.msra.mxu0 0
        %745 = vmatprep.subr.bf16.mxu0 0
        %746 = vmatpush2.bf16.xpose.msra.mxu0 0
        %747 = vmatprep.subr.bf16.mxu0 0
        %748 = vmatpush2.bf16.xpose.msra.mxu0 0
        %749 = vmatprep.subr.bf16.mxu0 0
        %750 = vmatpush2.bf16.xpose.msra.mxu0 0
        %751 = vmatprep.subr.bf16.mxu0 0
        %752 = vmatpush2.bf16.xpose.msra.mxu0 0
        %753 = vmatprep.subr.bf16.mxu0 0
        %754 = vmatpush2.bf16.xpose.msra.mxu0 0
        %755 = vmatprep.mubr.bf16.mxu0 0
        %756 = vmatmul.mubr.bf16.gmra.mxu0 %v718
        %v757 = vpop.f32.mrf.mxu0
        %v758 = vadd.f32 0.0, %v757
        %v759 = vpop.f32.mrf.mxu0
        %v760 = vpop.f32.mrf.mxu0
        %v761 = vpop.f32.mrf.mxu0
        %762 = vdwg.mxu0
        %v763 = vsel %vm380, %v758, -inf
        %764 = vmax.xlane.f32.xlu0 %v763
        %v765 = vpop.xlane.xlu0 %764
        %v766 = vsub.f32 %v758, %v765
        %v767 = vmul.f32 %v766, 1.442695
        %v768 = vpow.pop %v767
        %v769 = vsel %vm380, %v768, 0.0
        %770 = vadd.xlane.f32.xlu0 %v769
        %v771 = vpop.xlane.xlu0 %770
        %v772 = vrcp.pop %v771
        %v773 = vmul.f32 %v768, %v772
        %s774 = scalar_lea.vmem %s306, 24 [#allocation9]
        %775 = vst.msk [vmem:[%s774] sm:$0xff] %vm380, %v773
        %v776 = vpack.c.bf16 %v773, %v773
        %777 = vrot.lane.b32.xlu0 %v376, 40
        %v778 = vpop.permute.xlu0 %777
        %v780 = vsel %vm380, %v776, 0
        %v783 = vsel %vm445, %v778, 0
        %785 = vmatprep.subr.bf16.mxu0 0
        %786 = vmatpush1.bf16.msra.mxu0 0
        %787 = vmatprep.subr.bf16.mxu0 0
        %788 = vmatpush1.bf16.msra.mxu0 0
        %789 = vmatprep.subr.bf16.mxu0 0
        %790 = vmatpush1.bf16.msra.mxu0 0
        %791 = vmatprep.subr.bf16.mxu0 0
        %792 = vmatpush1.bf16.msra.mxu0 0
        %793 = vmatprep.subr.bf16.mxu0 0
        %794 = vmatpush1.bf16.msra.mxu0 0
        %795 = vmatprep.subr.bf16.mxu0 0
        %796 = vmatpush1.bf16.msra.mxu0 0
        %797 = vmatprep.subr.bf16.mxu0 0
        %798 = vmatpush1.bf16.msra.mxu0 0
        %799 = vmatprep.subr.bf16.mxu0 0
        %800 = vmatpush1.bf16.msra.mxu0 %v783
        %801 = vmatprep.subr.bf16.mxu0 0
        %802 = vmatpush2.bf16.msra.mxu0 0
        %803 = vmatprep.subr.bf16.mxu0 0
        %804 = vmatpush2.bf16.msra.mxu0 0
        %805 = vmatprep.subr.bf16.mxu0 0
        %806 = vmatpush2.bf16.msra.mxu0 0
        %807 = vmatprep.subr.bf16.mxu0 0
        %808 = vmatpush2.bf16.msra.mxu0 0
        %809 = vmatprep.subr.bf16.mxu0 0
        %810 = vmatpush2.bf16.msra.mxu0 0
        %811 = vmatprep.subr.bf16.mxu0 0
        %812 = vmatpush2.bf16.msra.mxu0 0
        %813 = vmatprep.subr.bf16.mxu0 0
        %814 = vmatpush2.bf16.msra.mxu0 0
        %815 = vmatprep.subr.bf16.mxu0 0
        %816 = vmatpush2.bf16.msra.mxu0 0
        %817 = vmatprep.mubr.bf16.mxu0 0
        %818 = vmatmul.mubr.bf16.gmra.mxu0 %v780
        %v819 = vpop.f32.mrf.mxu0
        %v820 = vadd.f32 0.0, %v819
        %v821 = vpop.f32.mrf.mxu0
        %v822 = vpop.f32.mrf.mxu0
        %v823 = vpop.f32.mrf.mxu0
        %824 = vdwg.mxu0
        %826 = vrot.lane.b32.xlu0 %v596, 8
        %v827 = vpop.permute.xlu0 %826
        %830 = vrot.lane.b32.xlu0 %v708, 16
        %v831 = vpop.permute.xlu0 %830
        %834 = vrot.lane.b32.xlu0 %v820, 24
        %v835 = vpop.permute.xlu0 %834
        %v837 = vsel %vm380, %v484, %v827
        %vm838 = vcmask 130048
        %v839 = vsel %vm838, %v837, %v831
        %vm840 = vcmask 195584
        %v841 = vsel %vm840, %v839, %v835
        %v842 = vpack.c.bf16 %v841, %v841
        %v843 = vld [vmem:[#allocation7] sm:$0xf]
        %v844 = vld [vmem:[#allocation7 + $0x4] sm:$0xf]
        %v845 = vld [vmem:[#allocation7 + $0x8] sm:$0xf]
        %v846 = vld [vmem:[#allocation7 + $0xc] sm:$0xf]
        %v847 = vld [vmem:[%s4] sm:$0x1]
        %v849 = vlaneseq
        %v850 = vshrl.u32 %v849, 7
        %v851 = vsub.s32 0, %v850
        %v852 = vrot.slane %v847, %v851
        %v858 = vunpack.c.l.b16 %v843
        %v859 = vunpack.c.l.b16 %v844
        %v860 = vunpack.c.l.b16 %v845
        %v861 = vunpack.c.l.b16 %v846
        %v862 = vpack.c.b16 %v859, %v858
        %v863 = vpack.c.b16 %v861, %v860
        %v867 = vsel %vm332, %v842, 0
        %869 = vmatprep.subr.bf16.mxu0 0
        %870 = vmatpush1.bf16.msra.mxu0 0
        %871 = vmatprep.subr.bf16.mxu0 0
        %872 = vmatpush1.bf16.msra.mxu0 0
        %873 = vmatprep.subr.bf16.mxu0 0
        %874 = vmatpush1.bf16.msra.mxu0 0
        %875 = vmatprep.subr.bf16.mxu0 0
        %876 = vmatpush1.bf16.msra.mxu0 0
        %877 = vmatprep.subr.bf16.mxu0 0
        %878 = vmatpush1.bf16.msra.mxu0 0
        %879 = vmatprep.subr.bf16.mxu0 0
        %880 = vmatpush1.bf16.msra.mxu0 0
        %881 = vmatprep.subr.bf16.mxu0 0
        %882 = vmatpush1.bf16.msra.mxu0 %v863
        %883 = vmatprep.subr.bf16.mxu0 0
        %884 = vmatpush1.bf16.msra.mxu0 %v862
        %885 = vmatprep.subr.bf16.mxu0 0
        %886 = vmatpush2.bf16.msra.mxu0 0
        %887 = vmatprep.subr.bf16.mxu0 0
        %888 = vmatpush2.bf16.msra.mxu0 0
        %889 = vmatprep.subr.bf16.mxu0 0
        %890 = vmatpush2.bf16.msra.mxu0 0
        %891 = vmatprep.subr.bf16.mxu0 0
        %892 = vmatpush2.bf16.msra.mxu0 0
        %893 = vmatprep.subr.bf16.mxu0 0
        %894 = vmatpush2.bf16.msra.mxu0 0
        %895 = vmatprep.subr.bf16.mxu0 0
        %896 = vmatpush2.bf16.msra.mxu0 0
        %897 = vmatprep.subr.bf16.mxu0 0
        %898 = vmatpush2.bf16.msra.mxu0 0
        %899 = vmatprep.subr.bf16.mxu0 0
        %900 = vmatpush2.bf16.msra.mxu0 0
        %901 = vmatprep.mubr.bf16.mxu0 0
        %902 = vmatmul.mubr.bf16.gmra.mxu0 %v867
        %v903 = vpop.f32.mrf.mxu0
        %v904 = vadd.f32 %v852, %v903
        %v905 = vpop.f32.mrf.mxu0
        %v906 = vpop.f32.mrf.mxu0
        %v907 = vpop.f32.mrf.mxu0
        %908 = vdwg.mxu0
        %909 = vst.msk [vmem:[%s299] sm:$0xff] %vm332, %v904
        %s910 = sand.u32 %s146, 1
        %s911 = scalar_lea.sflag [#allocation4], %s910
        %s912 = sand.u32 %s146, 1
        %s913 = smul.addr %s912, 8
        %s914 = scalar_lea.vmem [#allocation8], %s913
        %s915 = sand.u32 %s172, 1
        %s916 = scalar_lea.sflag [#allocation10], %s915
        %s917 = sand.u32 %s172, 1
        %s918 = smul.addr %s917, 32
        %s919 = scalar_lea.vmem [#allocation9], %s918
        // Predicated region
        $region53: #{tpu_custom_call.1} parent=39 // pred_check
          %p920 = pneg %p156
        $region54: #{tpu_custom_call.1} parent=39 // pred_check_branch
          %922 = sbr.rel (%p920) target = $region56
        $region55: #{tpu_custom_call.1} parent=39 // pred_region
          %s924 = ssub.s32 128, 128
          %925 = vsyncadd %s911, %s924
          %s926 = smul.addr %s28, 128
          %s927 = scalar_lea.hbm %s5, %s926
          %s929 = sshll.u32 %s914, 4
          %s930 = int_to_ptr.vmem [resolvable:$true] %s929
          %932 = dma.vmem_to_hbm [thread:$0]  %s930, 128, %s927, %s911
        $region56: #{tpu_custom_call.1} parent=39 // pred_fallthru
          _
        // Predicated region
        $region57: #{tpu_custom_call.1} parent=39 // pred_check
          %p933 = pneg %p182
        $region58: #{tpu_custom_call.1} parent=39 // pred_check_branch
          %935 = sbr.rel (%p933) target = $region60
        $region59: #{tpu_custom_call.1} parent=39 // pred_region
          %s937 = ssub.s32 512, 512
          %938 = vsyncadd %s916, %s937
          %s939 = smul.addr %s28, 4
          %s940 = smul.addr %s939, 128
          %s941 = scalar_lea.hbm %s6, %s940
          %s942 = sshll.u32 %s919, 4
          %s943 = int_to_ptr.vmem [resolvable:$true] %s942
          %948 = dma.vmem_to_hbm [thread:$0]  %s943, 512, %s941, %s916, 128, 128, 8
        $region60: #{tpu_custom_call.1} parent=39 // pred_fallthru
          _
      $region40: #{tpu_custom_call.1} parent=5 // pred_fallthru
        _
      %p949 = scmp.le.s32.totalorder 2, %s23
      // Predicated region
      $region61: #{tpu_custom_call.1} parent=5 // pred_check
        %p950 = pneg %p949
      $region62: #{tpu_custom_call.1} parent=5 // pred_check_branch
        %952 = sbr.rel (%p950) target = $region64
      $region63: #{tpu_custom_call.1} parent=5 // pred_region
        %s953 = ssub.s32 %s23, 2
        // Predicated region
        $region65: #{tpu_custom_call.1} parent=63 // pred_check
          %p954 = pneg %p162
        $region66: #{tpu_custom_call.1} parent=63 // pred_check_branch
          %956 = sbr.rel (%p954) target = $region68
        $region67: #{tpu_custom_call.1} parent=63 // pred_region
          %s957 = sand.u32 %s147, 1
          %s958 = scalar_lea.sflag [#allocation4], %s957
          %s959 = sand.u32 %s147, 1
          %s960 = smul.addr %s959, 8
          %s961 = scalar_lea.vmem [#allocation8], %s960
          %962 = dma.done %s958, 128
        $region68: #{tpu_custom_call.1} parent=63 // pred_fallthru
          _
        // Predicated region
        $region69: #{tpu_custom_call.1} parent=63 // pred_check
          %p963 = pneg %p188
        $region70: #{tpu_custom_call.1} parent=63 // pred_check_branch
          %965 = sbr.rel (%p963) target = $region72
        $region71: #{tpu_custom_call.1} parent=63 // pred_region
          %s966 = sand.u32 %s173, 1
          %s967 = scalar_lea.sflag [#allocation10], %s966
          %s968 = sand.u32 %s173, 1
          %s969 = smul.addr %s968, 32
          %s970 = scalar_lea.vmem [#allocation9], %s969
          %971 = dma.done %s967, 512
        $region72: #{tpu_custom_call.1} parent=63 // pred_fallthru
          _
      $region64: #{tpu_custom_call.1} parent=5 // pred_fallthru
        _
    $region6: #{tpu_custom_call.1} parent=1 // loop_footer
      %s27 = sadd.s32 1, %s23
    $region7: #{tpu_custom_call.1} parent=1 // loop_footer_branch
      %22 = sbr.rel target = $region3
    $region8: #{tpu_custom_call.1} parent=1 // loop_exit
      _
    %972 = vsyncpa [#allocation3], 1
    %s973 = scalar_lea.sflag [#allocation3], 1
    %974 = vsyncpa %s973, 1
    %975 = vsyncpa [#allocation6], 1
    %976 = vsyncpa [#allocation4], 1
    %s977 = scalar_lea.sflag [#allocation4], 1
    %978 = vsyncpa %s977, 1
    %979 = vsyncpa [#allocation10], 1
    %s980 = scalar_lea.sflag [#allocation10], 1
    %981 = vsyncpa %s980, 1

</llo_original>
